<compile_context>
chip_gen: v7x
topology: tpu7x:2x2x1
jax: 0.10.0
libtpu: 0.0.40
codegen_flags: <defaults>
</compile_context>

<pallas_src>
import jax
import jax.numpy as jnp
from jax.experimental import pallas as pl
from jax.experimental.pallas import tpu as pltpu


def _lm_head_softmax_kernel(
    z_ref,     # [B, H]   bf16  tanh-hidden activations, pre-scaled by 1/T (resident)
    w2_ref,    # [H, TN]  bf16  LM-head vocab tile (streamed, double-buffered)
    b2_ref,    # [1, TN]  f32   LM-head bias tile, pre-scaled by 1/T
    o_ref,     # [num_tiles, B, TN] f32  resident output (probabilities)
    m_buf,     # VMEM [B, 1]            f32  running max
    l_buf,     # VMEM [B, 1]            f32  running sum of exp
    tm_buf,    # VMEM [num_tiles, B, 1] f32  per-tile max snapshots (deferred rescale)
):
    j = pl.program_id(0)
    num_tiles = pl.num_programs(0)

    @pl.when(j == 0)
    def _init():
        m_buf[...] = jnp.full(m_buf.shape, -jnp.inf, jnp.float32)
        l_buf[...] = jnp.zeros(l_buf.shape, jnp.float32)

    # LM-head logits for this vocab tile (bf16 MXU, f32 accumulation).
    # Temperature is already folded into z and b2.
    logits = jnp.dot(z_ref[...], w2_ref[...],
                     preferred_element_type=jnp.float32) + b2_ref[...]

    # Online-softmax carry (m, l).  Previously written output slots are NOT
    # rescaled here -- that is deferred to the single epilogue pass.
    m_prev = m_buf[...]                                               # [B, 1]
    m_new = jnp.maximum(m_prev, jnp.max(logits, axis=-1, keepdims=True))
    e = jnp.exp(logits - m_new)                                       # [B, TN]
    l_buf[...] = l_buf[...] * jnp.exp(m_prev - m_new) + jnp.sum(e, -1, keepdims=True)
    m_buf[...] = m_new

    # Each output slot is written exactly once (unnormalized), together with
    # the running max it was referenced to.
    o_ref[j] = e
    tm_buf[j] = m_new

    @pl.when(j == num_tiles - 1)
    def _epilogue():
        # ONE pass: bring every tile to the final max and normalize.
        # Exact reciprocal (once per call, [B,1]) so probs sum to 1 exactly-ish.
        m_fin = m_buf[...]                                            # [B, 1]
        inv_l = 1.0 / l_buf[...]                                      # [B, 1]
        scale = jnp.exp(tm_buf[...] - m_fin[None, :, :]) * inv_l[None, :, :]
        o_ref[...] = o_ref[...] * scale


def _vmem_capacity_bytes(default=64 * 1024 * 1024):
    """Physical VMEM of the local TPU generation (conservative 64 MiB fallback)."""
    try:
        cap = getattr(pltpu.get_tpu_info(), "vmem_capacity_bytes", None)
        if cap:
            return int(cap)
    except Exception:
        pass
    return default


def _pick_vocab_tile(vocab, hidden, batch, vmem_bytes, max_tile=8192):
    """Largest TN (multiple of 128, divides vocab, <= max_tile) whose VMEM plan fits.

    Plan: 2x double-buffered (H, TN) bf16 W2 + 2x (1, TN) f32 b2 tiles
    + resident (num_tiles, B, TN) f32 output (= B*V*4, TN-independent)
    + z + small softmax scratch, against ~70% of physical VMEM.
    """
    budget = int(vmem_bytes * 0.70)
    fixed = batch * vocab * 4          # resident output block
    fixed += batch * hidden * 2        # z (bf16)
    fixed += 256 * 1024                # m / l / per-tile-max scratch + slack
    tn = min(vocab, max_tile)
    tn -= tn % 128
    tn = max(tn, 128)
    while tn > 128 and (vocab % tn or fixed + 2 * tn * (hidden * 2 + 4) > budget):
        tn -= 128
    return tn


def prepare_draft_params(params, temperature=0.7):
    """One-time preparation (NOT per decode step): bf16 weight casts, bias
    reshape and temperature folding, so the per-call forward pays no full-size
    HBM cast passes before the kernel starts."""
    inv_t = jnp.float32(1.0 / temperature)
    return {
        "embedding": params["embedding"].astype(jnp.bfloat16),
        "w1": params["w1"].astype(jnp.bfloat16),
        "b1": params["b1"].astype(jnp.float32),
        "w2": params["w2"].astype(jnp.bfloat16),
        "b2_over_t": (params["b2"].astype(jnp.float32) * inv_t).reshape(1, -1),
        "inv_temp": inv_t,
    }


def draft_model_forward(input_ids, prepared, block_v=None):
    """Equivalent of DraftModel.forward: softmax(model(ids).logits[:, -1, :] / T)."""
    emb = prepared["embedding"]
    w1 = prepared["w1"]
    b1 = prepared["b1"]
    w2 = prepared["w2"]
    b2_t = prepared["b2_over_t"]
    inv_t = prepared["inv_temp"]

    B = input_ids.shape[0]
    V, H = emb.shape
    assert w2.shape == (H, V) and V % 128 == 0

    # --- tiny inner-model prelude in plain XLA (O(B*H + H*H) bytes, once) ---
    # Last-token embedding gather + hidden layer; temperature folded into z
    # here (and into b2 at prepare time) so the kernel has no per-tile scale.
    h = jnp.take(emb, input_ids[:, -1].astype(jnp.int32), axis=0).astype(jnp.float32)
    z = jnp.tanh(h @ w1.astype(jnp.float32) + b1)
    z = (z * inv_t).astype(jnp.bfloat16)

    # --- generation-aware tiling / VMEM budget ---
    vmem_cap = _vmem_capacity_bytes()
    tn = block_v if block_v is not None else _pick_vocab_tile(V, H, B, vmem_cap)
    assert tn % 128 == 0 and V % tn == 0
    num_tiles = V // tn
    vmem_limit = max(32 * 1024 * 1024, int(vmem_cap * 3 // 4))

    cost = pl.CostEstimate(
        flops=2 * B * H * V,
        transcendentals=B * V,
        bytes_accessed=H * V * 2 + V * 4 + B * H * 2 + B * V * 4,
    )

    out = pl.pallas_call(
        _lm_head_softmax_kernel,
        out_shape=jax.ShapeDtypeStruct((num_tiles, B, tn), jnp.float32),
        grid_spec=pltpu.PrefetchScalarGridSpec(
            num_scalar_prefetch=0,
            grid=(num_tiles,),
            in_specs=[
                pl.BlockSpec((B, H), lambda j: (0, 0)),      # z (resident, tiny)
                pl.BlockSpec((H, tn), lambda j: (0, j)),     # W2 vocab tile (streamed)
                pl.BlockSpec((1, tn), lambda j: (0, j)),     # b2/T vocab tile
            ],
            out_specs=pl.BlockSpec((num_tiles, B, tn), lambda j: (0, 0, 0)),
            scratch_shapes=[
                pltpu.VMEM((B, 1), jnp.float32),             # running max
                pltpu.VMEM((B, 1), jnp.float32),             # running sum
                pltpu.VMEM((num_tiles, B, 1), jnp.float32),  # per-tile max snapshots
            ],
        ),
        compiler_params=pltpu.CompilerParams(
            # The vocab axis carries the online-softmax state -> "arbitrary".
            # TODO(synk): on v7x, split the vocab sweep across the two TensorCores
            # (core-parallel leading axis / core_map, per-core partial (m, l) and a
            # cheap combine pass) for ~2x on the W2-stream-bound path.
            # TODO(synk): if B*V*4 resident output pressures v7x's 64 MiB VMEM at
            # large batch, switch out_specs to per-tile writeback (index (j, 0, 0))
            # plus a second tiny normalization pass using the stored per-tile maxes.
            dimension_semantics=("arbitrary",),
            vmem_limit_bytes=vmem_limit,
        ),
        cost_estimate=cost,
    )(z, w2, b2_t)

    # Layout plumbing only: (num_tiles, B, TN) -> (B, V).
    return jnp.transpose(out, (1, 0, 2)).reshape(B, V)


def init_params(key, vocab_size, hidden):
    k0, k1, k2 = jax.random.split(key, 3)
    return {
        "embedding": jax.random.normal(k0, (vocab_size, hidden), jnp.float32) * 0.02,
        "w1": jax.random.normal(k1, (hidden, hidden), jnp.float32) * 0.1,
        "b1": jnp.zeros((hidden,), jnp.float32),
        "w2": jax.random.normal(k2, (hidden, vocab_size), jnp.float32) * 0.1,
        "b2": jnp.zeros((vocab_size,), jnp.float32),
    }


def _reference(input_ids, params, temperature):
    # Same bf16 weight quantization as the kernel, math in f32.
    emb = params["embedding"].astype(jnp.bfloat16).astype(jnp.float32)
    w1 = params["w1"].astype(jnp.bfloat16).astype(jnp.float32)
    w2 = params["w2"].astype(jnp.bfloat16).astype(jnp.float32)
    b1 = params["b1"].astype(jnp.float32)
    b2 = params["b2"].astype(jnp.float32)
    h = emb[input_ids[:, -1]]
    z = jnp.tanh(h @ w1 + b1)
    logits = (z @ w2 + b2) / temperature
    return jax.nn.softmax(logits, axis=-1)


if __name__ == "__main__":
    B, S, H, V = 2, 8, 32, 256
    temperature = 0.7

    key = jax.random.PRNGKey(0)
    kp, kx = jax.random.split(key)
    params = init_params(kp, V, H)
    input_ids = jax.random.randint(kx, (B, S), 0, V, dtype=jnp.int32)

    prepared = prepare_draft_params(params, temperature)   # one-time prep
    ref = _reference(input_ids, params, temperature)

    # block_v=128 -> two vocab tiles: exercises the online-softmax carry and
    # the deferred epilogue rescale.
    probs = draft_model_forward(input_ids, prepared, block_v=128)
    probs = jax.block_until_ready(probs)
    assert probs.shape == (B, V)
    assert jnp.allclose(jnp.sum(probs, axis=-1), 1.0, atol=1e-4)
    assert jnp.allclose(probs, ref, atol=5e-5, rtol=5e-3)

    # Auto (VMEM-budgeted) tile path: single vocab tile at this small V.
    probs_auto = draft_model_forward(input_ids, prepared)
    probs_auto = jax.block_until_ready(probs_auto)
    assert jnp.allclose(jnp.sum(probs_auto, axis=-1), 1.0, atol=1e-4)
    assert jnp.allclose(probs_auto, ref, atol=5e-5, rtol=5e-3)

    print("KERNEL_OK")
</pallas_src>

<mosaic_0001>
module attributes {stable_mosaic.version = 11 : i64} {
  func.func @_lm_head_softmax_kernel(%arg0: i32, %arg1: memref<2x32xbf16, #tpu.memory_space<vmem>>, %arg2: memref<32x128xbf16, #tpu.memory_space<vmem>>, %arg3: memref<1x128xf32, #tpu.memory_space<vmem>>, %arg4: memref<2x2x128xf32, #tpu.memory_space<vmem>>, %arg5: memref<2x1xf32, #tpu.memory_space<vmem>>, %arg6: memref<2x1xf32, #tpu.memory_space<vmem>>, %arg7: memref<2x2x1xf32, #tpu.memory_space<vmem>>) attributes {dimension_semantics = [#tpu.dimension_semantics<arbitrary>], iteration_bounds = array<i64: 2>, scalar_prefetch = 0 : i64, scratch_operands = 3 : i64, tpu.core_type = #tpu.core_type<tc>, window_params = [{pipeline_mode = #tpu.pipeline_mode<synchronous>, transform_indices = @transform_0, window_bounds = array<i64: 2, 32>}, {transform_indices = @transform_1, window_bounds = array<i64: 32, 128>}, {transform_indices = @transform_2, window_bounds = array<i64: 1, 128>}, {pipeline_mode = #tpu.pipeline_mode<synchronous>, transform_indices = @transform_3, window_bounds = array<i64: 2, 2, 128>}]} {
    %c0_i32 = arith.constant 0 : i32
    %0 = arith.cmpi eq, %arg0, %c0_i32 : i32
    %1 = arith.extui %0 : i1 to i32
    %c0_i32_0 = arith.constant 0 : i32
    %2 = arith.cmpi ne, %1, %c0_i32_0 : i32
    scf.if %2 {
      %cst_21 = arith.constant 0xFF800000 : f32
      %36 = vector.broadcast %cst_21 : f32 to vector<2x1xf32>
      %c0_22 = arith.constant 0 : index
      %c0_23 = arith.constant 0 : index
      %37 = vector.load %arg5[%c0_22, %c0_23] : memref<2x1xf32, #tpu.memory_space<vmem>>, vector<2x1xf32>
      tpu.vector_store %arg5[%c0_22, %c0_23], %36 {strides = array<i32>} : memref<2x1xf32, #tpu.memory_space<vmem>>, vector<2x1xf32>,
      %cst_24 = arith.constant 0.000000e+00 : f32
      %38 = vector.broadcast %cst_24 : f32 to vector<2x1xf32>
      %c0_25 = arith.constant 0 : index
      %c0_26 = arith.constant 0 : index
      %39 = vector.load %arg6[%c0_25, %c0_26] : memref<2x1xf32, #tpu.memory_space<vmem>>, vector<2x1xf32>
      tpu.vector_store %arg6[%c0_25, %c0_26], %38 {strides = array<i32>} : memref<2x1xf32, #tpu.memory_space<vmem>>, vector<2x1xf32>,
    } else {
    }
    %c0 = arith.constant 0 : index
    %c0_1 = arith.constant 0 : index
    %3 = vector.load %arg1[%c0, %c0_1] : memref<2x32xbf16, #tpu.memory_space<vmem>>, vector<2x32xbf16>
    %c0_2 = arith.constant 0 : index
    %c0_3 = arith.constant 0 : index
    %4 = vector.load %arg2[%c0_2, %c0_3] : memref<32x128xbf16, #tpu.memory_space<vmem>>, vector<32x128xbf16>
    %cst = arith.constant dense<0.000000e+00> : vector<2x128xf32>
    %5 = tpu.matmul %3, %4, %cst {dimension_numbers = #tpu.dot_dimension_numbers<[1], [0], [0], [1], [0, 0, 1, 1], [], []>} : vector<2x32xbf16>, vector<32x128xbf16>, vector<2x128xf32> -> vector<2x128xf32>
    %c0_4 = arith.constant 0 : index
    %c0_5 = arith.constant 0 : index
    %6 = vector.load %arg3[%c0_4, %c0_5] : memref<1x128xf32, #tpu.memory_space<vmem>>, vector<1x128xf32>
    %7 = vector.broadcast %6 : vector<1x128xf32> to vector<2x128xf32>
    %8 = arith.addf %5, %7 : vector<2x128xf32>
    %c0_6 = arith.constant 0 : index
    %c0_7 = arith.constant 0 : index
    %9 = vector.load %arg5[%c0_6, %c0_7] : memref<2x1xf32, #tpu.memory_space<vmem>>, vector<2x1xf32>
    %cst_8 = arith.constant dense<0xFF800000> : vector<2xf32>
    %10 = vector.multi_reduction <maximumf>, %8, %cst_8 [1] : vector<2x128xf32> to vector<2xf32>
    %11 = vector.shape_cast %10 : vector<2xf32> to vector<2x1xf32>
    %12 = arith.maximumf %9, %11 : vector<2x1xf32>
    %13 = vector.broadcast %12 : vector<2x1xf32> to vector<2x128xf32>
    %14 = arith.subf %8, %13 : vector<2x128xf32>
    %15 = math.exp %14 : vector<2x128xf32>
    %c0_9 = arith.constant 0 : index
    %c0_10 = arith.constant 0 : index
    %16 = vector.load %arg6[%c0_9, %c0_10] : memref<2x1xf32, #tpu.memory_space<vmem>>, vector<2x1xf32>
    %17 = arith.subf %9, %12 : vector<2x1xf32>
    %18 = math.exp %17 : vector<2x1xf32>
    %19 = arith.mulf %16, %18 : vector<2x1xf32>
    %cst_11 = arith.constant dense<0.000000e+00> : vector<2xf32>
    %20 = vector.multi_reduction <add>, %15, %cst_11 [1] : vector<2x128xf32> to vector<2xf32>
    %21 = vector.shape_cast %20 : vector<2xf32> to vector<2x1xf32>
    %22 = arith.addf %19, %21 : vector<2x1xf32>
    %c0_12 = arith.constant 0 : index
    %c0_13 = arith.constant 0 : index
    %23 = vector.load %arg6[%c0_12, %c0_13] : memref<2x1xf32, #tpu.memory_space<vmem>>, vector<2x1xf32>
    tpu.vector_store %arg6[%c0_12, %c0_13], %22 {strides = array<i32>} : memref<2x1xf32, #tpu.memory_space<vmem>>, vector<2x1xf32>,
    %c0_14 = arith.constant 0 : index
    %c0_15 = arith.constant 0 : index
    %24 = vector.load %arg5[%c0_14, %c0_15] : memref<2x1xf32, #tpu.memory_space<vmem>>, vector<2x1xf32>
    tpu.vector_store %arg5[%c0_14, %c0_15], %12 {strides = array<i32>} : memref<2x1xf32, #tpu.memory_space<vmem>>, vector<2x1xf32>,
    %25 = arith.index_cast %arg0 : i32 to index
    %c0_16 = arith.constant 0 : index
    %c0_17 = arith.constant 0 : index
    %26 = vector.load %arg4[%25, %c0_16, %c0_17] : memref<2x2x128xf32, #tpu.memory_space<vmem>>, vector<1x2x128xf32>
    %27 = vector.shape_cast %26 : vector<1x2x128xf32> to vector<2x128xf32>
    %28 = vector.shape_cast %15 : vector<2x128xf32> to vector<1x2x128xf32>
    tpu.vector_store %arg4[%25, %c0_16, %c0_17], %28 {strides = array<i32>} : memref<2x2x128xf32, #tpu.memory_space<vmem>>, vector<1x2x128xf32>,
    %29 = arith.index_cast %arg0 : i32 to index
    %c0_18 = arith.constant 0 : index
    %c0_19 = arith.constant 0 : index
    %30 = vector.load %arg7[%29, %c0_18, %c0_19] : memref<2x2x1xf32, #tpu.memory_space<vmem>>, vector<1x2x1xf32>
    %31 = vector.shape_cast %30 : vector<1x2x1xf32> to vector<2x1xf32>
    %32 = vector.shape_cast %12 : vector<2x1xf32> to vector<1x2x1xf32>
    tpu.vector_store %arg7[%29, %c0_18, %c0_19], %32 {strides = array<i32>} : memref<2x2x1xf32, #tpu.memory_space<vmem>>, vector<1x2x1xf32>,
    %c1_i32 = arith.constant 1 : i32
    %33 = arith.cmpi eq, %arg0, %c1_i32 : i32
    %34 = arith.extui %33 : i1 to i32
    %c0_i32_20 = arith.constant 0 : i32
    %35 = arith.cmpi ne, %34, %c0_i32_20 : i32
    scf.if %35 {
      %c0_21 = arith.constant 0 : index
      %c0_22 = arith.constant 0 : index
      %36 = vector.load %arg5[%c0_21, %c0_22] : memref<2x1xf32, #tpu.memory_space<vmem>>, vector<2x1xf32>
      %c0_23 = arith.constant 0 : index
      %c0_24 = arith.constant 0 : index
      %37 = vector.load %arg6[%c0_23, %c0_24] : memref<2x1xf32, #tpu.memory_space<vmem>>, vector<2x1xf32>
      %cst_25 = arith.constant 1.000000e+00 : f32
      %38 = vector.broadcast %cst_25 : f32 to vector<2x1xf32>
      %39 = arith.divf %38, %37 : vector<2x1xf32>
      %c0_26 = arith.constant 0 : index
      %c0_27 = arith.constant 0 : index
      %c0_28 = arith.constant 0 : index
      %40 = vector.load %arg7[%c0_26, %c0_27, %c0_28] : memref<2x2x1xf32, #tpu.memory_space<vmem>>, vector<2x2x1xf32>
      %41 = vector.shape_cast %36 : vector<2x1xf32> to vector<1x2x1xf32>
      %42 = vector.broadcast %41 : vector<1x2x1xf32> to vector<2x2x1xf32>
      %43 = arith.subf %40, %42 : vector<2x2x1xf32>
      %44 = math.exp %43 : vector<2x2x1xf32>
      %45 = vector.shape_cast %39 : vector<2x1xf32> to vector<1x2x1xf32>
      %46 = vector.broadcast %45 : vector<1x2x1xf32> to vector<2x2x1xf32>
      %47 = arith.mulf %44, %46 : vector<2x2x1xf32>
      %c0_29 = arith.constant 0 : index
      %c0_30 = arith.constant 0 : index
      %c0_31 = arith.constant 0 : index
      %48 = vector.load %arg4[%c0_29, %c0_30, %c0_31] : memref<2x2x128xf32, #tpu.memory_space<vmem>>, vector<2x2x128xf32>
      %49 = vector.broadcast %47 : vector<2x2x1xf32> to vector<2x2x128xf32>
      %50 = arith.mulf %48, %49 : vector<2x2x128xf32>
      %c0_32 = arith.constant 0 : index
      %c0_33 = arith.constant 0 : index
      %c0_34 = arith.constant 0 : index
      %51 = vector.load %arg4[%c0_32, %c0_33, %c0_34] : memref<2x2x128xf32, #tpu.memory_space<vmem>>, vector<2x2x128xf32>
      tpu.vector_store %arg4[%c0_32, %c0_33, %c0_34], %50 {strides = array<i32>} : memref<2x2x128xf32, #tpu.memory_space<vmem>>, vector<2x2x128xf32>,
    } else {
    }
    return
  }
  func.func @transform_0(%arg0: i32) -> (i32, i32) {
    %c0_i32 = arith.constant 0 : i32
    %c0_i32_0 = arith.constant 0 : i32
    %c0_i32_1 = arith.constant 0 : i32
    return %c0_i32, %c0_i32_0 : i32, i32
  }
  func.func @transform_1(%arg0: i32) -> (i32, i32) {
    %c0_i32 = arith.constant 0 : i32
    %c0_i32_0 = arith.constant 0 : i32
    return %c0_i32, %arg0 : i32, i32
  }
  func.func @transform_2(%arg0: i32) -> (i32, i32) {
    %c0_i32 = arith.constant 0 : i32
    %c0_i32_0 = arith.constant 0 : i32
    return %c0_i32, %arg0 : i32, i32
  }
  func.func @transform_3(%arg0: i32) -> (i32, i32, i32) {
    %c0_i32 = arith.constant 0 : i32
    %c0_i32_0 = arith.constant 0 : i32
    %c0_i32_1 = arith.constant 0 : i32
    %c0_i32_2 = arith.constant 0 : i32
    return %c0_i32, %c0_i32_0, %c0_i32_1 : i32, i32, i32
  }
}

</mosaic_0001>

<llo_original>
// kernel: tpu_custom_call.1
$region0: #{tpu_custom_call.1}
  #allocation0 [shape = 'u32[]', space=smem, size = 0x4, offset = 0x4, fixed_abs, tag = 'smem constant byte address 0x4 - core index']
  #allocation1 [shape = 'u32[144,128]{1,0:T(1,128)}', space=vmem, size = 0x12000, scoped, tag = 'internal scratch']
  #allocation2 [shape = 'f32[2,1]{1,0:T(2,128)}', space=vmem, size = 0x400, scoped, tag = 'scratch operand']
  #allocation3 [shape = 'f32[2,1]{1,0:T(2,128)}', space=vmem, size = 0x400, scoped, tag = 'scratch operand']
  #allocation4 [shape = 'f32[2,2,1]{2,1,0:T(2,128)}', space=vmem, size = 0x800, scoped, tag = 'scratch operand']
  %s0 = inlined_call_operand.hbm [shape: bf16[2,32], index: 0, kind: input, shape index: {}]
  %s1 = inlined_call_operand.hbm [shape: bf16[32,256], index: 1, kind: input, shape index: {}]
  %s2 = inlined_call_operand.vmem [shape: f32[1,256], index: 2, kind: input, shape index: {}]
  %s3 = inlined_call_operand.hbm [shape: f32[2,2,128], index: 3, kind: output, shape index: {}]
  %s4 = sld [smem:[#allocation0]]
  $region61: #{tpu_custom_call.1} parent=0
    _
  %s6 = ssub.s32 1, %s4
  %s7 = scalar_select 0, %s6, %s4
  $region1: #{tpu_custom_call.1} parent=0
    #allocation5 [shape = 'u8[512]{0}', space=vmem, size = 0x400, scoped, tag = 'input window, operand 0, single buffered']
    #allocation6 [shape = 's32[2]{0}', space=sflag, size = 0x8, scoped, tag = 'scoped memory for tpu_custom_call.1']
    #allocation7 [shape = 's32[2]{0}', space=sflag, size = 0x8, scoped, tag = 'scoped memory for tpu_custom_call.1']
    #allocation8 [shape = 'u8[16384]{0}', space=vmem, size = 0x4000, scoped, tag = 'input window, operand 1']
    #allocation9 [shape = 's32[2]{0}', space=sflag, size = 0x8, scoped, tag = 'scoped memory for tpu_custom_call.1']
    #allocation10 [shape = 'u8[2048]{0}', space=vmem, size = 0x800, scoped, tag = 'output window, operand 0, single buffered']
    %8 = vsyncpa [#allocation6], 0
    %9 = vsyncpa [#allocation9], 0
    %s10 = scalar_lea.sflag [#allocation9], 1
    %11 = vsyncpa %s10, 0
    %12 = vsyncpa [#allocation7], 0
    loop: start=0, step=1, limit=4
    $region2: #{tpu_custom_call.1} parent=1 // loop_pre_header
      _
    $region3: #{tpu_custom_call.1} parent=1 // loop_header
      %s14 = sphi 0, %s18
      %p15 = scmp.ge.s32.totalorder %s14, 4
      %s22 = sphi 0, %s22
      %s24 = sphi 0, %s22
      %s25 = sphi 0, %s24
      %s39 = sphi 0, %s25
      %s45 = sphi 0, %s47
      %s48 = sphi 0, %s45
      %s49 = sphi 0, %s48
      %s65 = sphi 0, %s49
      %s71 = sphi 0, %s73
      %s74 = sphi 0, %s71
      %s75 = sphi 0, %s74
      %s91 = sphi 0, %s75
      %s95 = sphi 0, %s95
      %s97 = sphi 0, %s95
      %s98 = sphi 0, %s97
      %s112 = sphi 0, %s98
    $region4: #{tpu_custom_call.1} parent=1 // loop_header_branch
      %17 = sbr.rel (%p15) target = $region8
    $region5: #{tpu_custom_call.1} parent=1 // loop_body
      %s19 = ssub.s32 %s14, 1
      %s20 = ssub.s32 %s14, 2
      %s21 = sadd.s32 %s14, 1
      %s23 = sadd.s32 %s22, 1
      %p26 = scmp.eq.s32.totalorder %s14, 1
      %p27 = scmp.ne.s32.totalorder %s22, %s24
      %p28 = scmp.eq.s32.totalorder %s14, 0
      %p29 = por %p27, %p28
      %p30 = scmp.ne.s32.totalorder %s22, %s24
      %p31 = scmp.eq.s32.totalorder %s19, 1
      %p32 = por %p30, %p31
      %p33 = scmp.ne.s32.totalorder %s24, %s25
      %p34 = scmp.eq.s32.totalorder %s19, 0
      %p35 = por %p33, %p34
      %p36 = scmp.ne.s32.totalorder %s24, %s25
      %p37 = scmp.eq.s32.totalorder %s20, 1
      %p38 = por %p36, %p37
      %p40 = scmp.ne.s32.totalorder %s25, %s39
      %p41 = scmp.eq.s32.totalorder %s20, 0
      %p42 = por %p40, %p41
      %s43 = ssub.s32 %s14, %s21
      %p44 = scmp.eq.s32.totalorder %s43, 0
      %s46 = sadd.s32 %s45, 1
      %s47 = scalar_select %p44, %s45, %s46
      %p50 = pneg %p44
      %p51 = scmp.eq.s32.totalorder %s14, 1
      %p52 = por %p50, %p51
      %p53 = scmp.ne.s32.totalorder %s45, %s48
      %p54 = scmp.eq.s32.totalorder %s14, 0
      %p55 = por %p53, %p54
      %p56 = scmp.ne.s32.totalorder %s45, %s48
      %p57 = scmp.eq.s32.totalorder %s19, 1
      %p58 = por %p56, %p57
      %p59 = scmp.ne.s32.totalorder %s48, %s49
      %p60 = scmp.eq.s32.totalorder %s19, 0
      %p61 = por %p59, %p60
      %p62 = scmp.ne.s32.totalorder %s48, %s49
      %p63 = scmp.eq.s32.totalorder %s20, 1
      %p64 = por %p62, %p63
      %p66 = scmp.ne.s32.totalorder %s49, %s65
      %p67 = scmp.eq.s32.totalorder %s20, 0
      %p68 = por %p66, %p67
      %s69 = ssub.s32 %s14, %s21
      %p70 = scmp.eq.s32.totalorder %s69, 0
      %s72 = sadd.s32 %s71, 1
      %s73 = scalar_select %p70, %s71, %s72
      %p76 = pneg %p70
      %p77 = scmp.eq.s32.totalorder %s14, 1
      %p78 = por %p76, %p77
      %p79 = scmp.ne.s32.totalorder %s71, %s74
      %p80 = scmp.eq.s32.totalorder %s14, 0
      %p81 = por %p79, %p80
      %p82 = scmp.ne.s32.totalorder %s71, %s74
      %p83 = scmp.eq.s32.totalorder %s19, 1
      %p84 = por %p82, %p83
      %p85 = scmp.ne.s32.totalorder %s74, %s75
      %p86 = scmp.eq.s32.totalorder %s19, 0
      %p87 = por %p85, %p86
      %p88 = scmp.ne.s32.totalorder %s74, %s75
      %p89 = scmp.eq.s32.totalorder %s20, 1
      %p90 = por %p88, %p89
      %p92 = scmp.ne.s32.totalorder %s75, %s91
      %p93 = scmp.eq.s32.totalorder %s20, 0
      %p94 = por %p92, %p93
      %s96 = sadd.s32 %s95, 1
      %p99 = scmp.eq.s32.totalorder %s14, 1
      %p100 = scmp.ne.s32.totalorder %s95, %s97
      %p101 = scmp.eq.s32.totalorder %s14, 0
      %p102 = por %p100, %p101
      %p103 = scmp.ne.s32.totalorder %s95, %s97
      %p104 = scmp.eq.s32.totalorder %s19, 1
      %p105 = por %p103, %p104
      %p106 = scmp.ne.s32.totalorder %s97, %s98
      %p107 = scmp.eq.s32.totalorder %s19, 0
      %p108 = por %p106, %p107
      %p109 = scmp.ne.s32.totalorder %s97, %s98
      %p110 = scmp.eq.s32.totalorder %s20, 1
      %p111 = por %p109, %p110
      %p113 = scmp.ne.s32.totalorder %s98, %s112
      %p114 = scmp.eq.s32.totalorder %s20, 0
      %p115 = por %p113, %p114
      %p116 = scmp.le.s32.totalorder 1, %s14
      %p117 = scmp.lt.s32.totalorder %s14, 3
      %p118 = pnand %p116, %p117
      %p119 = pneg %p118
      // Predicated region
      $region9: #{tpu_custom_call.1} parent=5 // pred_check
        _
      $region10: #{tpu_custom_call.1} parent=5 // pred_check_branch
        %121 = sbr.rel (%p118) target = $region12
      $region11: #{tpu_custom_call.1} parent=5 // pred_region
        %s122 = ssub.s32 %s14, 1
        // Predicated region
        $region13: #{tpu_custom_call.1} parent=11 // pred_check
          %p123 = pneg %p35
        $region14: #{tpu_custom_call.1} parent=11 // pred_check_branch
          %125 = sbr.rel (%p123) target = $region16
        $region15: #{tpu_custom_call.1} parent=11 // pred_region
          %s127 = ssub.s32 16, 16
          %128 = vsyncadd [#allocation6], %s127
          %s130 = sshll.u32 [#allocation5], 4
          %s131 = int_to_ptr.vmem [resolvable:$true] %s130
          %133 = dma.hbm_to_vmem [thread:$0]  %s0, 16, %s131, [#allocation6]
        $region16: #{tpu_custom_call.1} parent=11 // pred_fallthru
          _
      $region12: #{tpu_custom_call.1} parent=5 // pred_fallthru
        _
      %p134 = scmp.lt.s32.totalorder %s14, 2
      // Predicated region
      $region17: #{tpu_custom_call.1} parent=5 // pred_check
        %p135 = pneg %p134
      $region18: #{tpu_custom_call.1} parent=5 // pred_check_branch
        %137 = sbr.rel (%p135) target = $region20
      $region19: #{tpu_custom_call.1} parent=5 // pred_region
        // Predicated region
        $region21: #{tpu_custom_call.1} parent=19 // pred_check
          %p138 = pneg %p55
        $region22: #{tpu_custom_call.1} parent=19 // pred_check_branch
          %140 = sbr.rel (%p138) target = $region24
        $region23: #{tpu_custom_call.1} parent=19 // pred_region
          %s141 = sand.u32 %s45, 1
          %s142 = scalar_lea.sflag [#allocation9], %s141
          %s143 = sand.u32 %s45, 1
          %s144 = smul.addr %s143, 16
          %s145 = scalar_lea.vmem [#allocation8], %s144
          %s147 = ssub.s32 256, 256
          %148 = vsyncadd %s142, %s147
          %s149 = smul.addr %s14, 64
          %s150 = scalar_lea.hbm %s1, %s149
          %s151 = sshll.u32 %s145, 4
          %s152 = int_to_ptr.vmem [resolvable:$true] %s151
          %157 = dma.hbm_to_vmem [thread:$0]  %s150, 256, %s152, %s142, 128, 64, 4
        $region24: #{tpu_custom_call.1} parent=19 // pred_fallthru
          _
        // Predicated region
        $region25: #{tpu_custom_call.1} parent=19 // pred_check
          %p158 = pneg %p81
        $region26: #{tpu_custom_call.1} parent=19 // pred_check_branch
          %160 = sbr.rel (%p158) target = $region28
        $region27: #{tpu_custom_call.1} parent=19 // pred_region
          %p161 = scmp.lt.s32.totalorder %s14, 1
          %s162 = scalar_select %p161, %s14, 1
          %s163 = scalar_lea.vmem %s2, %s162
        $region28: #{tpu_custom_call.1} parent=19 // pred_fallthru
          _
      $region20: #{tpu_custom_call.1} parent=5 // pred_fallthru
        _
      %p164 = scmp.le.s32.totalorder 1, %s14
      %p165 = scmp.lt.s32.totalorder %s14, 3
      %p166 = pnand %p164, %p165
      %p167 = pneg %p166
      // Predicated region
      $region29: #{tpu_custom_call.1} parent=5 // pred_check
        _
      $region30: #{tpu_custom_call.1} parent=5 // pred_check_branch
        %169 = sbr.rel (%p166) target = $region32
      $region31: #{tpu_custom_call.1} parent=5 // pred_region
        %s170 = ssub.s32 %s14, 1
        // Predicated region
        $region33: #{tpu_custom_call.1} parent=31 // pred_check
          %p171 = pneg %p35
        $region34: #{tpu_custom_call.1} parent=31 // pred_check_branch
          %173 = sbr.rel (%p171) target = $region36
        $region35: #{tpu_custom_call.1} parent=31 // pred_region
          %174 = dma.done [#allocation6], 16
        $region36: #{tpu_custom_call.1} parent=31 // pred_fallthru
          _
        %s175 = sand.u32 %s48, 1
        %s176 = scalar_lea.sflag [#allocation9], %s175
        %s177 = sand.u32 %s48, 1
        %s178 = smul.addr %s177, 16
        %s179 = scalar_lea.vmem [#allocation8], %s178
        // Predicated region
        $region37: #{tpu_custom_call.1} parent=31 // pred_check
          %p180 = pneg %p61
        $region38: #{tpu_custom_call.1} parent=31 // pred_check_branch
          %182 = sbr.rel (%p180) target = $region40
        $region39: #{tpu_custom_call.1} parent=31 // pred_region
          %183 = dma.done %s176, 256
        $region40: #{tpu_custom_call.1} parent=31 // pred_fallthru
          _
        %p184 = pneg %p35
        %p185 = pneg %p32
        %s186 = sand.u32 %s48, 1
        %s187 = scalar_lea.sflag [#allocation9], %s186
        %s188 = sand.u32 %s48, 1
        %s189 = smul.addr %s188, 16
        %s190 = scalar_lea.vmem [#allocation8], %s189
        %p191 = pneg %p61
        %p192 = pneg %p58
        %p193 = scmp.lt.s32.totalorder %s19, 1
        %s194 = scalar_select %p193, %s19, 1
        %s195 = scalar_lea.vmem %s2, %s194
        %p196 = pneg %p87
        %p197 = pneg %p84
        %p198 = pneg %p108
        %p199 = pneg %p105
        %p200 = scmp.lt.s32.totalorder %s19, 1
        %s201 = scalar_select %p200, %s19, 1
        %s202 = scalar_lea.vmem %s2, %s201
        %p204 = scmp.eq.s32.totalorder %s19, 0
        // Predicated region
        $region41: #{tpu_custom_call.1} parent=31 // pred_check
          %p205 = pneg %p204
        $region42: #{tpu_custom_call.1} parent=31 // pred_check_branch
          %207 = sbr.rel (%p205) target = $region44
        $region43: #{tpu_custom_call.1} parent=31 // pred_region
          %vm208 = vcmask 1024
          %209 = vst.msk [vmem:[#allocation2] sm:$0x3] %vm208, -inf
          %210 = vst.msk [vmem:[#allocation3] sm:$0x3] %vm208, 0.0
        $region44: #{tpu_custom_call.1} parent=31 // pred_fallthru
          _
        %v211 = vld [vmem:[#allocation5] sm:$0x1]
        %v212 = vld [vmem:[%s179] sm:$0xf]
        %v213 = vld [vmem:[%s179 + $0x4] sm:$0xf]
        %v214 = vld [vmem:[%s179 + $0x8] sm:$0xf]
        %v215 = vld [vmem:[%s179 + $0xc] sm:$0xf]
        %v216 = vld [vmem:[%s202] sm:$0x1]
        %v218 = vlaneseq
        %v219 = vshrl.u32 %v218, 7
        %v220 = vsub.s32 0, %v219
        %v221 = vrot.slane %v216, %v220
        %v227 = vunpack.c.l.b16 %v212
        %v228 = vunpack.c.l.b16 %v213
        %v229 = vunpack.c.l.b16 %v214
        %v230 = vunpack.c.l.b16 %v215
        %v231 = vpack.c.b16 %v228, %v227
        %v232 = vpack.c.b16 %v230, %v229
        %vm235 = vcmask 261120
        %v237 = vsel %vm235, %v211, 0
        %239 = vmatprep.subr.bf16.mxu0 0
        %240 = vmatpush1.bf16.msra.mxu0 %v231
        %241 = vmatprep.subr.bf16.mxu0 0
        %242 = vmatpush1.bf16.msra.mxu0 %v232
        %243 = vmatprep.subr.bf16.mxu0 0
        %244 = vmatpush1.bf16.msra.mxu0 0
        %245 = vmatprep.subr.bf16.mxu0 0
        %246 = vmatpush1.bf16.msra.mxu0 0
        %247 = vmatprep.subr.bf16.mxu0 0
        %248 = vmatpush1.bf16.msra.mxu0 0
        %249 = vmatprep.subr.bf16.mxu0 0
        %250 = vmatpush1.bf16.msra.mxu0 0
        %251 = vmatprep.subr.bf16.mxu0 0
        %252 = vmatpush1.bf16.msra.mxu0 0
        %253 = vmatprep.subr.bf16.mxu0 0
        %254 = vmatpush1.bf16.msra.mxu0 0
        %255 = vmatprep.subr.bf16.mxu0 0
        %256 = vmatpush1.bf16.msra.mxu0 0
        %257 = vmatprep.subr.bf16.mxu0 0
        %258 = vmatpush1.bf16.msra.mxu0 0
        %259 = vmatprep.subr.bf16.mxu0 0
        %260 = vmatpush1.bf16.msra.mxu0 0
        %261 = vmatprep.subr.bf16.mxu0 0
        %262 = vmatpush1.bf16.msra.mxu0 0
        %263 = vmatprep.subr.bf16.mxu0 0
        %264 = vmatpush1.bf16.msra.mxu0 0
        %265 = vmatprep.subr.bf16.mxu0 0
        %266 = vmatpush1.bf16.msra.mxu0 0
        %267 = vmatprep.subr.bf16.mxu0 0
        %268 = vmatpush1.bf16.msra.mxu0 0
        %269 = vmatprep.subr.bf16.mxu0 0
        %270 = vmatpush1.bf16.msra.mxu0 0
        %271 = vmatprep.mubr.bf16.mxu0 0
        %272 = vmatmul.mubr.bf16.gmra.mrb[0].mxu0 %v237
        %v273 = vpop.f32.mrb[0].mxu0
        %v274 = vadd.f32 %v221, %v273
        %v275 = vpop.f32.mrb[0].mxu0
        %v276 = vpop.f32.mrb[0].mxu0
        %v277 = vpop.f32.mrb[0].mxu0
        %278 = vdwg.mxu0
        %v279 = vld [vmem:[#allocation2] sm:$0x3]
        %vm280 = vcmask 1041408
        %v281 = vsel %vm280, %v274, -inf
        %282 = vmax.xlane.f32.xlu0 %v281
        %v283 = vpop.xlane.xlu0 %282
        %v284 = vmax.f32 %v279, %v283
        %286 = vset.pattern.permute.xlu0 0
        %287 = vperm.xlu0 %286, %v284
        %v288 = vpop.permute.xlu0 %287
        %v290 = vsub.f32 %v274, %v288
        %v291 = vmul.f32 %v290, 1.442695
        %v292 = vpow.pop %v291
        %v293 = vld [vmem:[#allocation3] sm:$0x3]
        %v294 = vsub.f32 %v279, %v284
        %v295 = vmul.f32 %v294, 1.442695
        %v296 = vpow.pop %v295
        %v297 = vmul.f32 %v293, %v296
        %v298 = vsel %vm280, %v292, 0.0
        %299 = vadd.xlane.f32.xlu0 %v298
        %v300 = vpop.xlane.xlu0 %299
        %v301 = vadd.f32 %v297, %v300
        %vm302 = vcmask 1024
        %303 = vst.msk [vmem:[#allocation3] sm:$0x3] %vm302, %v301
        %304 = vst.msk [vmem:[#allocation2] sm:$0x3] %vm302, %v284
        %s305 = smul.u32 %s19, 2
        %s306 = scalar_lea.vmem [#allocation10], %s305
        %307 = vst [vmem:[%s306] sm:$0x3] %v292
        %s308 = scalar_lea.vmem [#allocation4], %s305
        %309 = vst.msk [vmem:[%s308] sm:$0x3] %vm302, %v284
        %p310 = scmp.eq.s32.totalorder %s19, 1
        // Predicated region
        $region45: #{tpu_custom_call.1} parent=31 // pred_check
          %p311 = pneg %p310
        $region46: #{tpu_custom_call.1} parent=31 // pred_check_branch
          %313 = sbr.rel (%p311) target = $region48
        $region47: #{tpu_custom_call.1} parent=31 // pred_region
          %v314 = vld [vmem:[#allocation2] sm:$0x3]
          %v315 = vld [vmem:[#allocation3] sm:$0x3]
          %v316 = vrcp.pop %v315
          %v317 = vmul.f32 1.0, %v316
          %v318 = vld [vmem:[#allocation4] sm:$0x3]
          %v319 = vld [vmem:[#allocation4 + $0x2] sm:$0x3]
          %v320 = vsub.f32 %v318, %v314
          %v321 = vsub.f32 %v319, %v314
          %v322 = vmul.f32 %v320, 1.442695
          %v323 = vpow.pop %v322
          %v324 = vmul.f32 %v321, 1.442695
          %v325 = vpow.pop %v324
          %v326 = vmul.f32 %v323, %v317
          %v327 = vmul.f32 %v325, %v317
          %v328 = vld [vmem:[#allocation10] sm:$0x3]
          %v329 = vld [vmem:[#allocation10 + $0x2] sm:$0x3]
          %331 = vset.pattern.permute.xlu0 0
          %332 = vperm.xlu0 %331, %v326
          %v333 = vpop.permute.xlu0 %332
          %336 = vset.pattern.permute.xlu0 0
          %337 = vperm.xlu0 %336, %v327
          %v338 = vpop.permute.xlu0 %337
          %v340 = vmul.f32 %v328, %v333
          %v341 = vmul.f32 %v329, %v338
          %342 = vst [vmem:[#allocation10] sm:$0x3] %v340
          %343 = vst [vmem:[#allocation10 + $0x2] sm:$0x3] %v341
        $region48: #{tpu_custom_call.1} parent=31 // pred_fallthru
          _
        // Predicated region
        $region49: #{tpu_custom_call.1} parent=31 // pred_check
          %p344 = pneg %p105
        $region50: #{tpu_custom_call.1} parent=31 // pred_check_branch
          %346 = sbr.rel (%p344) target = $region52
        $region51: #{tpu_custom_call.1} parent=31 // pred_region
          %s348 = ssub.s32 64, 64
          %349 = vsyncadd [#allocation7], %s348
          %s350 = sshll.u32 [#allocation10], 4
          %s351 = int_to_ptr.vmem [resolvable:$true] %s350
          %356 = dma.vmem_to_hbm [thread:$0]  %s351, 64, %s3, [#allocation7], 32, 32, 2
        $region52: #{tpu_custom_call.1} parent=31 // pred_fallthru
          _
        // Predicated region
        $region53: #{tpu_custom_call.1} parent=31 // pred_check
          %p357 = pneg %p105
        $region54: #{tpu_custom_call.1} parent=31 // pred_check_branch
          %359 = sbr.rel (%p357) target = $region56
        $region55: #{tpu_custom_call.1} parent=31 // pred_region
          %360 = dma.done [#allocation7], 64
        $region56: #{tpu_custom_call.1} parent=31 // pred_fallthru
          _
      $region32: #{tpu_custom_call.1} parent=5 // pred_fallthru
        _
      %p361 = scmp.le.s32.totalorder 2, %s14
      // Predicated region
      $region57: #{tpu_custom_call.1} parent=5 // pred_check
        %p362 = pneg %p361
      $region58: #{tpu_custom_call.1} parent=5 // pred_check_branch
        %364 = sbr.rel (%p362) target = $region60
      $region59: #{tpu_custom_call.1} parent=5 // pred_region
        %s365 = ssub.s32 %s14, 2
      $region60: #{tpu_custom_call.1} parent=5 // pred_fallthru
        _
    $region6: #{tpu_custom_call.1} parent=1 // loop_footer
      %s18 = sadd.s32 1, %s14
    $region7: #{tpu_custom_call.1} parent=1 // loop_footer_branch
      %13 = sbr.rel target = $region3
    $region8: #{tpu_custom_call.1} parent=1 // loop_exit
      _
    %366 = vsyncpa [#allocation6], 1
    %s367 = scalar_lea.sflag [#allocation6], 1
    %368 = vsyncpa %s367, 1
    %369 = vsyncpa [#allocation9], 1
    %s370 = scalar_lea.sflag [#allocation9], 1
    %371 = vsyncpa %s370, 1
    %372 = vsyncpa [#allocation7], 1
    %s373 = scalar_lea.sflag [#allocation7], 1
    %374 = vsyncpa %s373, 1

</llo_original>
